<compile_context>
chip_gen: v7x
topology: tpu7x:2x2x1
jax: 0.10.0
libtpu: 0.0.40
codegen_flags: <defaults>
</compile_context>

<pallas_src>
import functools

import jax
import jax.numpy as jnp
from jax import lax
from jax.experimental import pallas as pl
from jax.experimental.pallas import tpu as pltpu


def projection_mlp_kernel(x_ref, w1_ref, gamma_ref, beta_ref, w2_ref, b2_ref, o_ref):
    k = pl.program_id(1)  # hidden-dim (reduction) axis; axis 0 = output-column tile

    # ---- Layer 1 for this hidden tile: bf16 MXU matmul, f32 accumulation.
    #      x stays f32 in VMEM (one HBM read); cast to bf16 here, in-kernel. ----
    h = jnp.dot(x_ref[...].astype(jnp.bfloat16), w1_ref[...],
                preferred_element_type=jnp.float32)

    # ---- BatchNorm1d (training-mode, biased batch variance): fused single-pass
    #      stats (sum / sum-of-squares), folded into one per-column scale/shift ----
    # TODO(synk): running_mean/running_var are not emitted; add (1, hidden) mean/var
    # outputs tiled by k if the caller needs to update the BN running statistics.
    inv_n = 1.0 / h.shape[0]
    mean = jnp.sum(h, axis=0, keepdims=True) * inv_n
    ex2 = jnp.sum(h * h, axis=0, keepdims=True) * inv_n
    var = jnp.maximum(ex2 - mean * mean, 0.0)          # guard f32 cancellation
    scale = gamma_ref[...] * lax.rsqrt(var + 1e-5)     # rsqrt -> EUP slot
    shift = beta_ref[...] - mean * scale

    # ---- fused BN-apply + ReLU ----
    h = jnp.maximum(h * scale + shift, 0.0)

    # ---- Layer 2 partial product for this hidden tile, accumulated directly into
    #      the VMEM-resident output block; initialized with the bias on step 0 ----
    part = jnp.dot(h.astype(jnp.bfloat16), w2_ref[...],
                   preferred_element_type=jnp.float32)

    @pl.when(k == 0)
    def _():
        o_ref[...] = b2_ref[...] + part

    @pl.when(k > 0)
    def _():
        o_ref[...] += part


def _vmem_budget_bytes():
    """~85% of this generation's VMEM capacity (headroom for internal scratch)."""
    try:
        cap = int(pltpu.get_tpu_info().vmem_capacity_bytes)
    except Exception:
        cap = 64 << 20  # conservative fallback (v7x per-TC VMEM)
    return int(cap * 0.85)


def _working_set_bytes(N, in_dim, tile_h, tile_out, n_out_tiles, weight_buffers):
    out_bufs = 1 if n_out_tiles == 1 else 2
    return (N * in_dim * 4                              # x (f32, single buffer)
            + weight_buffers * in_dim * tile_h * 2      # w1 tile (bf16)
            + 2 * 2 * tile_h * 4                        # gamma/beta tiles (f32)
            + weight_buffers * tile_h * tile_out * 2    # w2 tile (bf16)
            + out_bufs * tile_out * 4                   # b2 (f32)
            + out_bufs * N * tile_out * 4               # output block (f32 accumulator)
            + 2 * N * tile_h * 4)                       # h + BN temporaries (f32)


def _pick_tile_out(out_pad):
    # Column-split the output (gives a megacore-parallel axis on v7x) only when
    # out_dim is large enough that re-doing layer 1 per column tile is negligible.
    if out_pad >= 512 and (out_pad // 2) % 128 == 0:
        return out_pad // 2
    return out_pad


def _pick_tile_h(hidden, fits):
    # Single 256-aligned grid step when the whole hidden dim is small and fits
    # (each grid step costs ~0.35us; the v6e/v7x MXU is 256 deep); otherwise the
    # largest 512/256/128 tile that fits so the next weight DMA overlaps compute.
    if hidden <= 512 and fits(hidden):
        return hidden
    for t in (512, 256, 128):
        if hidden % t == 0 and fits(t):
            return t
    return hidden  # last resort: one step over the full hidden dim


def _block_spec(shape, index_map, buffer_count=None):
    """BlockSpec with an optional explicit buffer count (graceful fallback if this
    jax version's BlockSpec has no pipeline_mode / Buffered)."""
    if buffer_count is None:
        return pl.BlockSpec(shape, index_map)
    try:
        return pl.BlockSpec(shape, index_map, pipeline_mode=pl.Buffered(buffer_count))
    except (TypeError, AttributeError):
        return pl.BlockSpec(shape, index_map)


def prepare_projection_mlp_params(w1, gamma, beta, w2, b2):
    """One-time weight prep (amortize across calls): bf16 cast of the MXU operands
    and lane-dense padding of out_dim up to a multiple of 128."""
    hidden, out_dim = w2.shape
    out_pad = ((out_dim + 127) // 128) * 128
    w1_bf = jnp.asarray(w1, jnp.bfloat16)
    w2_bf = jnp.pad(jnp.asarray(w2, jnp.float32),
                    ((0, 0), (0, out_pad - out_dim))).astype(jnp.bfloat16)
    b2_p = jnp.pad(jnp.asarray(b2, jnp.float32).reshape(1, out_dim),
                   ((0, 0), (0, out_pad - out_dim)))
    gamma_f = jnp.asarray(gamma, jnp.float32).reshape(1, hidden)
    beta_f = jnp.asarray(beta, jnp.float32).reshape(1, hidden)
    return w1_bf, gamma_f, beta_f, w2_bf, b2_p, out_dim


@functools.partial(
    jax.jit,
    static_argnames=("out_dim", "tile_h", "tile_out", "weight_buffers",
                     "explicit_buffering"))
def projection_mlp_prepared(x, w1_bf, gamma_f, beta_f, w2_bf, b2_p, *,
                            out_dim, tile_h=None, tile_out=None,
                            weight_buffers=2, explicit_buffering=True):
    """x: [N, in_dim] f32; prepared weights from prepare_projection_mlp_params().
    Returns [N, out_dim] f32."""
    N, in_dim = x.shape
    hidden = w1_bf.shape[1]
    out_pad = w2_bf.shape[1]

    budget = _vmem_budget_bytes()
    if tile_out is None:
        tile_out = _pick_tile_out(out_pad)
    assert out_pad % tile_out == 0
    n_out_tiles = out_pad // tile_out
    if tile_h is None:
        tile_h = _pick_tile_h(
            hidden,
            lambda t: 2 * _working_set_bytes(N, in_dim, t, tile_out,
                                             n_out_tiles, weight_buffers) <= budget)
    assert hidden % tile_h == 0, "tile_h must divide the hidden dimension"
    n_h_tiles = hidden // tile_h

    ws = _working_set_bytes(N, in_dim, tile_h, tile_out, n_out_tiles, weight_buffers)
    vmem_limit = int(min(budget, max(2 * ws, 8 << 20)))

    def spec(shape, index_map, bufs=None):
        return _block_spec(shape, index_map, bufs if explicit_buffering else None)

    # Only pass explicit buffer counts where they differ from the default (2).
    wb = None if weight_buffers == 2 else weight_buffers
    const_out = 1 if n_out_tiles == 1 else None

    flops = 2 * N * in_dim * hidden + 2 * N * hidden * out_pad + 10 * N * hidden
    bytes_accessed = (N * in_dim * 4 + in_dim * hidden * 2 + hidden * out_pad * 2
                      + (2 * hidden + out_pad) * 4 + N * out_pad * 4)

    out_padded = pl.pallas_call(
        projection_mlp_kernel,
        out_shape=jax.ShapeDtypeStruct((N, out_pad), jnp.float32),
        grid_spec=pltpu.PrefetchScalarGridSpec(
            num_scalar_prefetch=0,
            grid=(n_out_tiles, n_h_tiles),
            in_specs=[
                spec((N, in_dim), lambda j, k: (0, 0), 1),            # x (resident)
                spec((in_dim, tile_h), lambda j, k: (0, k), wb),      # w1 tile
                spec((1, tile_h), lambda j, k: (0, k)),               # gamma tile
                spec((1, tile_h), lambda j, k: (0, k)),               # beta tile
                spec((tile_h, tile_out), lambda j, k: (k, j), wb),    # w2 tile
                spec((1, tile_out), lambda j, k: (0, j), const_out),  # b2
            ],
            out_specs=spec((N, tile_out), lambda j, k: (0, j), const_out),
        ),
        compiler_params=pltpu.CompilerParams(
            # j: independent output-column tiles (megacore-parallel on v7x);
            # k: hidden-dim reduction (output block index is constant across it).
            dimension_semantics=("parallel", "arbitrary"),
            vmem_limit_bytes=vmem_limit,
        ),
        cost_estimate=pl.CostEstimate(flops=flops, transcendentals=hidden,
                                      bytes_accessed=bytes_accessed),
    )(x.astype(jnp.float32), w1_bf, gamma_f, beta_f, w2_bf, b2_p)

    if out_pad == out_dim:
        return out_padded
    return out_padded[:, :out_dim]


def projection_mlp(x, w1, gamma, beta, w2, b2, **kwargs):
    """Convenience one-shot wrapper (weight prep + kernel). For repeated use, call
    prepare_projection_mlp_params() once and reuse the prepared weights."""
    w1_bf, gamma_f, beta_f, w2_bf, b2_p, out_dim = prepare_projection_mlp_params(
        w1, gamma, beta, w2, b2)
    return projection_mlp_prepared(x, w1_bf, gamma_f, beta_f, w2_bf, b2_p,
                                   out_dim=out_dim, **kwargs)


def projection_mlp_ref_f32(x, w1, gamma, beta, w2, b2):
    """Pure-f32 reference matching the PyTorch module (training-mode BN)."""
    h = x @ w1
    mean = jnp.mean(h, axis=0, keepdims=True)
    var = jnp.mean((h - mean) ** 2, axis=0, keepdims=True)
    h = (h - mean) * lax.rsqrt(var + 1e-5) * gamma.reshape(1, -1) + beta.reshape(1, -1)
    h = jnp.maximum(h, 0.0)
    return h @ w2 + b2.reshape(1, -1)


def projection_mlp_ref_bf16(x, w1, gamma, beta, w2, b2):
    """Reference mirroring the kernel's precision (bf16 matmul operands, f32 stats,
    single-pass batch variance)."""
    h = jnp.dot(x.astype(jnp.bfloat16), w1.astype(jnp.bfloat16),
                preferred_element_type=jnp.float32)
    inv_n = 1.0 / h.shape[0]
    mean = jnp.sum(h, axis=0, keepdims=True) * inv_n
    var = jnp.maximum(jnp.sum(h * h, axis=0, keepdims=True) * inv_n - mean * mean, 0.0)
    scale = gamma.reshape(1, -1) * lax.rsqrt(var + 1e-5)
    shift = beta.reshape(1, -1) - mean * scale
    h = jnp.maximum(h * scale + shift, 0.0).astype(jnp.bfloat16)
    return jnp.dot(h, w2.astype(jnp.bfloat16),
                   preferred_element_type=jnp.float32) + b2.reshape(1, -1)


if __name__ == "__main__":
    # Small deterministic example (module defaults: hidden_dim=256, out_dim=50)
    N, in_dim, hidden_dim, out_dim = 8, 32, 256, 50

    key = jax.random.PRNGKey(0)
    k_x, k_w1, k_g, k_b, k_w2, k_b2 = jax.random.split(key, 6)

    x = jax.random.normal(k_x, (N, in_dim), dtype=jnp.float32)
    # nn.Linear-like init (uniform in +-1/sqrt(fan_in)), pre-transposed to [in, out]
    w1 = jax.random.uniform(k_w1, (in_dim, hidden_dim), dtype=jnp.float32,
                            minval=-1.0 / in_dim ** 0.5, maxval=1.0 / in_dim ** 0.5)
    gamma = 1.0 + 0.1 * jax.random.normal(k_g, (1, hidden_dim), dtype=jnp.float32)
    beta = 0.1 * jax.random.normal(k_b, (1, hidden_dim), dtype=jnp.float32)
    w2 = jax.random.uniform(k_w2, (hidden_dim, out_dim), dtype=jnp.float32,
                            minval=-1.0 / hidden_dim ** 0.5, maxval=1.0 / hidden_dim ** 0.5)
    b2 = jax.random.uniform(k_b2, (1, out_dim), dtype=jnp.float32,
                            minval=-1.0 / hidden_dim ** 0.5, maxval=1.0 / hidden_dim ** 0.5)

    # Amortizable weight prep (bf16 cast + lane-dense padding), then the kernel.
    w1_bf, gamma_f, beta_f, w2_bf, b2_p, od = prepare_projection_mlp_params(
        w1, gamma, beta, w2, b2)
    try:
        out = projection_mlp_prepared(x, w1_bf, gamma_f, beta_f, w2_bf, b2_p,
                                      out_dim=od)
    except Exception:
        # Graceful degradation if explicit single-buffering isn't supported here.
        out = projection_mlp_prepared(x, w1_bf, gamma_f, beta_f, w2_bf, b2_p,
                                      out_dim=od, explicit_buffering=False)
    out = jax.block_until_ready(out)
    assert out.shape == (N, out_dim)

    # Tight check vs a reference with the same matmul precision as the kernel.
    ref_bf16 = projection_mlp_ref_bf16(x, w1, gamma, beta, w2, b2)
    assert jnp.allclose(out, ref_bf16, atol=2e-3, rtol=2e-3), \
        "mismatch vs bf16-matmul reference"

    # Loose semantic sanity check vs the pure-f32 PyTorch-equivalent reference.
    ref_f32 = projection_mlp_ref_f32(x, w1, gamma, beta, w2, b2)
    assert jnp.allclose(out, ref_f32, atol=1e-1, rtol=1e-1), \
        "mismatch vs f32 reference"

    print("KERNEL_OK")
</pallas_src>

<mosaic_0001>
module attributes {stable_mosaic.version = 11 : i64} {
  func.func @projection_mlp_kernel(%arg0: i32, %arg1: i32, %arg2: memref<8x32xf32, #tpu.memory_space<vmem>>, %arg3: memref<32x256xbf16, #tpu.memory_space<vmem>>, %arg4: memref<1x256xf32, #tpu.memory_space<vmem>>, %arg5: memref<1x256xf32, #tpu.memory_space<vmem>>, %arg6: memref<256x128xbf16, #tpu.memory_space<vmem>>, %arg7: memref<1x128xf32, #tpu.memory_space<vmem>>, %arg8: memref<8x128xf32, #tpu.memory_space<vmem>>) attributes {dimension_semantics = [#tpu.dimension_semantics<parallel>, #tpu.dimension_semantics<arbitrary>], iteration_bounds = array<i64: 1, 1>, scalar_prefetch = 0 : i64, scratch_operands = 0 : i64, tpu.core_type = #tpu.core_type<tc>, window_params = [{pipeline_mode = #tpu.pipeline_mode<synchronous>, transform_indices = @transform_0, window_bounds = array<i64: 8, 32>}, {transform_indices = @transform_1, window_bounds = array<i64: 32, 256>}, {transform_indices = @transform_2, window_bounds = array<i64: 1, 256>}, {transform_indices = @transform_3, window_bounds = array<i64: 1, 256>}, {transform_indices = @transform_4, window_bounds = array<i64: 256, 128>}, {pipeline_mode = #tpu.pipeline_mode<synchronous>, transform_indices = @transform_5, window_bounds = array<i64: 1, 128>}, {pipeline_mode = #tpu.pipeline_mode<synchronous>, transform_indices = @transform_6, window_bounds = array<i64: 8, 128>}]} {
    %c0 = arith.constant 0 : index
    %c0_0 = arith.constant 0 : index
    %0 = vector.load %arg2[%c0, %c0_0] : memref<8x32xf32, #tpu.memory_space<vmem>>, vector<8x32xf32>
    %1 = arith.truncf %0 : vector<8x32xf32> to vector<8x32xbf16>
    %c0_1 = arith.constant 0 : index
    %c0_2 = arith.constant 0 : index
    %2 = vector.load %arg3[%c0_1, %c0_2] : memref<32x256xbf16, #tpu.memory_space<vmem>>, vector<32x256xbf16>
    %cst = arith.constant dense<0.000000e+00> : vector<8x256xf32>
    %3 = tpu.matmul %1, %2, %cst {dimension_numbers = #tpu.dot_dimension_numbers<[1], [0], [0], [1], [0, 0, 1, 1], [], []>} : vector<8x32xbf16>, vector<32x256xbf16>, vector<8x256xf32> -> vector<8x256xf32>
    %cst_3 = arith.constant dense<0.000000e+00> : vector<256xf32>
    %4 = vector.multi_reduction <add>, %3, %cst_3 [0] : vector<8x256xf32> to vector<256xf32>
    %5 = vector.shape_cast %4 : vector<256xf32> to vector<1x256xf32>
    %cst_4 = arith.constant 1.250000e-01 : f32
    %6 = vector.broadcast %cst_4 : f32 to vector<1x256xf32>
    %7 = arith.mulf %5, %6 : vector<1x256xf32>
    %8 = arith.mulf %3, %3 : vector<8x256xf32>
    %cst_5 = arith.constant dense<0.000000e+00> : vector<256xf32>
    %9 = vector.multi_reduction <add>, %8, %cst_5 [0] : vector<8x256xf32> to vector<256xf32>
    %10 = vector.shape_cast %9 : vector<256xf32> to vector<1x256xf32>
    %cst_6 = arith.constant 1.250000e-01 : f32
    %11 = vector.broadcast %cst_6 : f32 to vector<1x256xf32>
    %12 = arith.mulf %10, %11 : vector<1x256xf32>
    %13 = arith.mulf %7, %7 : vector<1x256xf32>
    %14 = arith.subf %12, %13 : vector<1x256xf32>
    %cst_7 = arith.constant 0.000000e+00 : f32
    %15 = vector.broadcast %cst_7 : f32 to vector<1x256xf32>
    %16 = arith.maximumf %14, %15 : vector<1x256xf32>
    %c0_8 = arith.constant 0 : index
    %c0_9 = arith.constant 0 : index
    %17 = vector.load %arg4[%c0_8, %c0_9] : memref<1x256xf32, #tpu.memory_space<vmem>>, vector<1x256xf32>
    %cst_10 = arith.constant 9.99999974E-6 : f32
    %18 = vector.broadcast %cst_10 : f32 to vector<1x256xf32>
    %19 = arith.addf %16, %18 : vector<1x256xf32>
    %20 = math.rsqrt %19 : vector<1x256xf32>
    %21 = arith.mulf %17, %20 : vector<1x256xf32>
    %c0_11 = arith.constant 0 : index
    %c0_12 = arith.constant 0 : index
    %22 = vector.load %arg5[%c0_11, %c0_12] : memref<1x256xf32, #tpu.memory_space<vmem>>, vector<1x256xf32>
    %23 = arith.mulf %7, %21 : vector<1x256xf32>
    %24 = arith.subf %22, %23 : vector<1x256xf32>
    %25 = vector.broadcast %21 : vector<1x256xf32> to vector<8x256xf32>
    %26 = arith.mulf %3, %25 : vector<8x256xf32>
    %27 = vector.broadcast %24 : vector<1x256xf32> to vector<8x256xf32>
    %28 = arith.addf %26, %27 : vector<8x256xf32>
    %cst_13 = arith.constant 0.000000e+00 : f32
    %29 = vector.broadcast %cst_13 : f32 to vector<8x256xf32>
    %30 = arith.maximumf %28, %29 : vector<8x256xf32>
    %31 = arith.truncf %30 : vector<8x256xf32> to vector<8x256xbf16>
    %c0_14 = arith.constant 0 : index
    %c0_15 = arith.constant 0 : index
    %32 = vector.load %arg6[%c0_14, %c0_15] : memref<256x128xbf16, #tpu.memory_space<vmem>>, vector<256x128xbf16>
    %cst_16 = arith.constant dense<0.000000e+00> : vector<8x128xf32>
    %33 = tpu.matmul %31, %32, %cst_16 {dimension_numbers = #tpu.dot_dimension_numbers<[1], [0], [0], [1], [0, 0, 1, 1], [], []>} : vector<8x256xbf16>, vector<256x128xbf16>, vector<8x128xf32> -> vector<8x128xf32>
    %c0_i32 = arith.constant 0 : i32
    %34 = arith.cmpi eq, %arg1, %c0_i32 : i32
    %35 = arith.extui %34 : i1 to i32
    %c0_i32_17 = arith.constant 0 : i32
    %36 = arith.cmpi ne, %35, %c0_i32_17 : i32
    scf.if %36 {
      %c0_20 = arith.constant 0 : index
      %c0_21 = arith.constant 0 : index
      %40 = vector.load %arg7[%c0_20, %c0_21] : memref<1x128xf32, #tpu.memory_space<vmem>>, vector<1x128xf32>
      %41 = vector.broadcast %40 : vector<1x128xf32> to vector<8x128xf32>
      %42 = arith.addf %41, %33 : vector<8x128xf32>
      %c0_22 = arith.constant 0 : index
      %c0_23 = arith.constant 0 : index
      %43 = vector.load %arg8[%c0_22, %c0_23] : memref<8x128xf32, #tpu.memory_space<vmem>>, vector<8x128xf32>
      tpu.vector_store %arg8[%c0_22, %c0_23], %42 {strides = array<i32>} : memref<8x128xf32, #tpu.memory_space<vmem>>, vector<8x128xf32>,
    } else {
    }
    %c0_i32_18 = arith.constant 0 : i32
    %37 = arith.cmpi sgt, %arg1, %c0_i32_18 : i32
    %38 = arith.extui %37 : i1 to i32
    %c0_i32_19 = arith.constant 0 : i32
    %39 = arith.cmpi ne, %38, %c0_i32_19 : i32
    scf.if %39 {
      %c0_20 = arith.constant 0 : index
      %c0_21 = arith.constant 0 : index
      %40 = vector.load %arg8[%c0_20, %c0_21] : memref<8x128xf32, #tpu.memory_space<vmem>>, vector<8x128xf32>
      %41 = arith.addf %40, %33 : vector<8x128xf32>
      %c0_22 = arith.constant 0 : index
      %c0_23 = arith.constant 0 : index
      %42 = vector.load %arg8[%c0_22, %c0_23] : memref<8x128xf32, #tpu.memory_space<vmem>>, vector<8x128xf32>
      tpu.vector_store %arg8[%c0_22, %c0_23], %41 {strides = array<i32>} : memref<8x128xf32, #tpu.memory_space<vmem>>, vector<8x128xf32>,
    } else {
    }
    return
  }
  func.func @transform_0(%arg0: i32, %arg1: i32) -> (i32, i32) {
    %c0_i32 = arith.constant 0 : i32
    %c0_i32_0 = arith.constant 0 : i32
    %c0_i32_1 = arith.constant 0 : i32
    return %c0_i32, %c0_i32_0 : i32, i32
  }
  func.func @transform_1(%arg0: i32, %arg1: i32) -> (i32, i32) {
    %c0_i32 = arith.constant 0 : i32
    %c0_i32_0 = arith.constant 0 : i32
    return %c0_i32, %arg1 : i32, i32
  }
  func.func @transform_2(%arg0: i32, %arg1: i32) -> (i32, i32) {
    %c0_i32 = arith.constant 0 : i32
    %c0_i32_0 = arith.constant 0 : i32
    return %c0_i32, %arg1 : i32, i32
  }
  func.func @transform_3(%arg0: i32, %arg1: i32) -> (i32, i32) {
    %c0_i32 = arith.constant 0 : i32
    %c0_i32_0 = arith.constant 0 : i32
    return %c0_i32, %arg1 : i32, i32
  }
  func.func @transform_4(%arg0: i32, %arg1: i32) -> (i32, i32) {
    %c0_i32 = arith.constant 0 : i32
    return %arg1, %arg0 : i32, i32
  }
  func.func @transform_5(%arg0: i32, %arg1: i32) -> (i32, i32) {
    %c0_i32 = arith.constant 0 : i32
    %c0_i32_0 = arith.constant 0 : i32
    return %c0_i32, %arg0 : i32, i32
  }
  func.func @transform_6(%arg0: i32, %arg1: i32) -> (i32, i32) {
    %c0_i32 = arith.constant 0 : i32
    %c0_i32_0 = arith.constant 0 : i32
    return %c0_i32, %arg0 : i32, i32
  }
}

module attributes {stable_mosaic.version = 11 : i64} {
  func.func @projection_mlp_kernel(%arg0: i32, %arg1: i32, %arg2: memref<8x32xf32, #tpu.memory_space<vmem>>, %arg3: memref<32x256xbf16, #tpu.memory_space<vmem>>, %arg4: memref<1x256xf32, #tpu.memory_space<vmem>>, %arg5: memref<1x256xf32, #tpu.memory_space<vmem>>, %arg6: memref<256x128xbf16, #tpu.memory_space<vmem>>, %arg7: memref<1x128xf32, #tpu.memory_space<vmem>>, %arg8: memref<8x128xf32, #tpu.memory_space<vmem>>) attributes {dimension_semantics = [#tpu.dimension_semantics<parallel>, #tpu.dimension_semantics<arbitrary>], iteration_bounds = array<i64: 1, 1>, scalar_prefetch = 0 : i64, scratch_operands = 0 : i64, tpu.core_type = #tpu.core_type<tc>, window_params = [{pipeline_mode = #tpu.pipeline_mode<synchronous>, transform_indices = @transform_0, window_bounds = array<i64: 8, 32>}, {transform_indices = @transform_1, window_bounds = array<i64: 32, 256>}, {transform_indices = @transform_2, window_bounds = array<i64: 1, 256>}, {transform_indices = @transform_3, window_bounds = array<i64: 1, 256>}, {transform_indices = @transform_4, window_bounds = array<i64: 256, 128>}, {transform_indices = @transform_5, window_bounds = array<i64: 1, 128>}, {transform_indices = @transform_6, window_bounds = array<i64: 8, 128>}]} {
    %c0 = arith.constant 0 : index
    %c0_0 = arith.constant 0 : index
    %0 = vector.load %arg2[%c0, %c0_0] : memref<8x32xf32, #tpu.memory_space<vmem>>, vector<8x32xf32>
    %1 = arith.truncf %0 : vector<8x32xf32> to vector<8x32xbf16>
    %c0_1 = arith.constant 0 : index
    %c0_2 = arith.constant 0 : index
    %2 = vector.load %arg3[%c0_1, %c0_2] : memref<32x256xbf16, #tpu.memory_space<vmem>>, vector<32x256xbf16>
    %cst = arith.constant dense<0.000000e+00> : vector<8x256xf32>
    %3 = tpu.matmul %1, %2, %cst {dimension_numbers = #tpu.dot_dimension_numbers<[1], [0], [0], [1], [0, 0, 1, 1], [], []>} : vector<8x32xbf16>, vector<32x256xbf16>, vector<8x256xf32> -> vector<8x256xf32>
    %cst_3 = arith.constant dense<0.000000e+00> : vector<256xf32>
    %4 = vector.multi_reduction <add>, %3, %cst_3 [0] : vector<8x256xf32> to vector<256xf32>
    %5 = vector.shape_cast %4 : vector<256xf32> to vector<1x256xf32>
    %cst_4 = arith.constant 1.250000e-01 : f32
    %6 = vector.broadcast %cst_4 : f32 to vector<1x256xf32>
    %7 = arith.mulf %5, %6 : vector<1x256xf32>
    %8 = arith.mulf %3, %3 : vector<8x256xf32>
    %cst_5 = arith.constant dense<0.000000e+00> : vector<256xf32>
    %9 = vector.multi_reduction <add>, %8, %cst_5 [0] : vector<8x256xf32> to vector<256xf32>
    %10 = vector.shape_cast %9 : vector<256xf32> to vector<1x256xf32>
    %cst_6 = arith.constant 1.250000e-01 : f32
    %11 = vector.broadcast %cst_6 : f32 to vector<1x256xf32>
    %12 = arith.mulf %10, %11 : vector<1x256xf32>
    %13 = arith.mulf %7, %7 : vector<1x256xf32>
    %14 = arith.subf %12, %13 : vector<1x256xf32>
    %cst_7 = arith.constant 0.000000e+00 : f32
    %15 = vector.broadcast %cst_7 : f32 to vector<1x256xf32>
    %16 = arith.maximumf %14, %15 : vector<1x256xf32>
    %c0_8 = arith.constant 0 : index
    %c0_9 = arith.constant 0 : index
    %17 = vector.load %arg4[%c0_8, %c0_9] : memref<1x256xf32, #tpu.memory_space<vmem>>, vector<1x256xf32>
    %cst_10 = arith.constant 9.99999974E-6 : f32
    %18 = vector.broadcast %cst_10 : f32 to vector<1x256xf32>
    %19 = arith.addf %16, %18 : vector<1x256xf32>
    %20 = math.rsqrt %19 : vector<1x256xf32>
    %21 = arith.mulf %17, %20 : vector<1x256xf32>
    %c0_11 = arith.constant 0 : index
    %c0_12 = arith.constant 0 : index
    %22 = vector.load %arg5[%c0_11, %c0_12] : memref<1x256xf32, #tpu.memory_space<vmem>>, vector<1x256xf32>
    %23 = arith.mulf %7, %21 : vector<1x256xf32>
    %24 = arith.subf %22, %23 : vector<1x256xf32>
    %25 = vector.broadcast %21 : vector<1x256xf32> to vector<8x256xf32>
    %26 = arith.mulf %3, %25 : vector<8x256xf32>
    %27 = vector.broadcast %24 : vector<1x256xf32> to vector<8x256xf32>
    %28 = arith.addf %26, %27 : vector<8x256xf32>
    %cst_13 = arith.constant 0.000000e+00 : f32
    %29 = vector.broadcast %cst_13 : f32 to vector<8x256xf32>
    %30 = arith.maximumf %28, %29 : vector<8x256xf32>
    %31 = arith.truncf %30 : vector<8x256xf32> to vector<8x256xbf16>
    %c0_14 = arith.constant 0 : index
    %c0_15 = arith.constant 0 : index
    %32 = vector.load %arg6[%c0_14, %c0_15] : memref<256x128xbf16, #tpu.memory_space<vmem>>, vector<256x128xbf16>
    %cst_16 = arith.constant dense<0.000000e+00> : vector<8x128xf32>
    %33 = tpu.matmul %31, %32, %cst_16 {dimension_numbers = #tpu.dot_dimension_numbers<[1], [0], [0], [1], [0, 0, 1, 1], [], []>} : vector<8x256xbf16>, vector<256x128xbf16>, vector<8x128xf32> -> vector<8x128xf32>
    %c0_i32 = arith.constant 0 : i32
    %34 = arith.cmpi eq, %arg1, %c0_i32 : i32
    %35 = arith.extui %34 : i1 to i32
    %c0_i32_17 = arith.constant 0 : i32
    %36 = arith.cmpi ne, %35, %c0_i32_17 : i32
    scf.if %36 {
      %c0_20 = arith.constant 0 : index
      %c0_21 = arith.constant 0 : index
      %40 = vector.load %arg7[%c0_20, %c0_21] : memref<1x128xf32, #tpu.memory_space<vmem>>, vector<1x128xf32>
      %41 = vector.broadcast %40 : vector<1x128xf32> to vector<8x128xf32>
      %42 = arith.addf %41, %33 : vector<8x128xf32>
      %c0_22 = arith.constant 0 : index
      %c0_23 = arith.constant 0 : index
      %43 = vector.load %arg8[%c0_22, %c0_23] : memref<8x128xf32, #tpu.memory_space<vmem>>, vector<8x128xf32>
      tpu.vector_store %arg8[%c0_22, %c0_23], %42 {strides = array<i32>} : memref<8x128xf32, #tpu.memory_space<vmem>>, vector<8x128xf32>,
    } else {
    }
    %c0_i32_18 = arith.constant 0 : i32
    %37 = arith.cmpi sgt, %arg1, %c0_i32_18 : i32
    %38 = arith.extui %37 : i1 to i32
    %c0_i32_19 = arith.constant 0 : i32
    %39 = arith.cmpi ne, %38, %c0_i32_19 : i32
    scf.if %39 {
      %c0_20 = arith.constant 0 : index
      %c0_21 = arith.constant 0 : index
      %40 = vector.load %arg8[%c0_20, %c0_21] : memref<8x128xf32, #tpu.memory_space<vmem>>, vector<8x128xf32>
      %41 = arith.addf %40, %33 : vector<8x128xf32>
      %c0_22 = arith.constant 0 : index
      %c0_23 = arith.constant 0 : index
      %42 = vector.load %arg8[%c0_22, %c0_23] : memref<8x128xf32, #tpu.memory_space<vmem>>, vector<8x128xf32>
      tpu.vector_store %arg8[%c0_22, %c0_23], %41 {strides = array<i32>} : memref<8x128xf32, #tpu.memory_space<vmem>>, vector<8x128xf32>,
    } else {
    }
    return
  }
  func.func @transform_0(%arg0: i32, %arg1: i32) -> (i32, i32) {
    %c0_i32 = arith.constant 0 : i32
    %c0_i32_0 = arith.constant 0 : i32
    %c0_i32_1 = arith.constant 0 : i32
    return %c0_i32, %c0_i32_0 : i32, i32
  }
  func.func @transform_1(%arg0: i32, %arg1: i32) -> (i32, i32) {
    %c0_i32 = arith.constant 0 : i32
    %c0_i32_0 = arith.constant 0 : i32
    return %c0_i32, %arg1 : i32, i32
  }
  func.func @transform_2(%arg0: i32, %arg1: i32) -> (i32, i32) {
    %c0_i32 = arith.constant 0 : i32
    %c0_i32_0 = arith.constant 0 : i32
    return %c0_i32, %arg1 : i32, i32
  }
  func.func @transform_3(%arg0: i32, %arg1: i32) -> (i32, i32) {
    %c0_i32 = arith.constant 0 : i32
    %c0_i32_0 = arith.constant 0 : i32
    return %c0_i32, %arg1 : i32, i32
  }
  func.func @transform_4(%arg0: i32, %arg1: i32) -> (i32, i32) {
    %c0_i32 = arith.constant 0 : i32
    return %arg1, %arg0 : i32, i32
  }
  func.func @transform_5(%arg0: i32, %arg1: i32) -> (i32, i32) {
    %c0_i32 = arith.constant 0 : i32
    %c0_i32_0 = arith.constant 0 : i32
    return %c0_i32, %arg0 : i32, i32
  }
  func.func @transform_6(%arg0: i32, %arg1: i32) -> (i32, i32) {
    %c0_i32 = arith.constant 0 : i32
    %c0_i32_0 = arith.constant 0 : i32
    return %c0_i32, %arg0 : i32, i32
  }
}

</mosaic_0001>

<llo_original>
// kernel: projection_mlp_prepared.1
$region0: #{projection_mlp_prepared.1}
  #allocation0 [shape = 'u32[]', space=smem, size = 0x4, offset = 0x4, fixed_abs, tag = 'smem constant byte address 0x4 - core index']
  #allocation1 [shape = 'u32[144,128]{1,0:T(1,128)}', space=vmem, size = 0x12000, scoped, tag = 'internal scratch']
  %s0 = inlined_call_operand.hbm [shape: f32[8,32], index: 0, kind: input, shape index: {}]
  %s1 = inlined_call_operand.hbm [shape: bf16[32,256], index: 1, kind: input, shape index: {}]
  %s2 = inlined_call_operand.vmem [shape: f32[1,256], index: 2, kind: input, shape index: {}]
  %s3 = inlined_call_operand.vmem [shape: f32[1,256], index: 3, kind: input, shape index: {}]
  %s4 = inlined_call_operand.hbm [shape: bf16[256,128], index: 4, kind: input, shape index: {}]
  %s5 = inlined_call_operand.vmem [shape: f32[1,128], index: 5, kind: input, shape index: {}]
  %s6 = inlined_call_operand.hbm [shape: f32[8,128], index: 6, kind: output, shape index: {}]
  %s7 = sld [smem:[#allocation0]]
  $region54: #{projection_mlp_prepared.1} parent=0
    _
  %s9 = ssub.s32 1, %s7
  %s10 = scalar_select 0, %s9, %s7
  $region1: #{projection_mlp_prepared.1} parent=0
    #allocation2 [shape = 'u8[4096]{0}', space=vmem, size = 0x1000, scoped, tag = 'input window, operand 0, single buffered']
    #allocation3 [shape = 's32[1]{0}', space=sflag, size = 0x4, scoped, tag = 'scoped memory for projection_mlp_prepared.1']
    #allocation4 [shape = 's32[1]{0}', space=sflag, size = 0x4, scoped, tag = 'scoped memory for projection_mlp_prepared.1']
    #allocation5 [shape = 'u8[16384]{0}', space=vmem, size = 0x4000, scoped, tag = 'input window, operand 1, single buffered']
    #allocation6 [shape = 's32[1]{0}', space=sflag, size = 0x4, scoped, tag = 'scoped memory for projection_mlp_prepared.1']
    #allocation7 [shape = 'u8[65536]{0}', space=vmem, size = 0x10000, scoped, tag = 'input window, operand 4, single buffered']
    #allocation8 [shape = 'u8[4096]{0}', space=vmem, size = 0x1000, scoped, tag = 'output window, operand 0, single buffered']
    %11 = vsyncpa [#allocation3], 0
    %12 = vsyncpa [#allocation6], 0
    %13 = vsyncpa [#allocation4], 0
    // Predicated region
    $region2: #{projection_mlp_prepared.1} parent=1 // pred_check
      _
    $region3: #{projection_mlp_prepared.1} parent=1 // pred_check_branch
      %15 = sbr.rel (0) target = $region5
    $region4: #{projection_mlp_prepared.1} parent=1 // pred_region
      %s17 = ssub.s32 128, 128
      %18 = vsyncadd [#allocation3], %s17
      %s20 = sshll.u32 [#allocation2], 4
      %s21 = int_to_ptr.vmem [resolvable:$true] %s20
      %23 = dma.hbm_to_vmem [thread:$0]  %s0, 128, %s21, [#allocation3]
    $region5: #{projection_mlp_prepared.1} parent=1 // pred_fallthru
      _
    // Predicated region
    $region6: #{projection_mlp_prepared.1} parent=1 // pred_check
      _
    $region7: #{projection_mlp_prepared.1} parent=1 // pred_check_branch
      %25 = sbr.rel (0) target = $region9
    $region8: #{projection_mlp_prepared.1} parent=1 // pred_region
      %s27 = ssub.s32 512, 512
      %28 = vsyncadd [#allocation6], %s27
      %s29 = sshll.u32 [#allocation5], 4
      %s30 = int_to_ptr.vmem [resolvable:$true] %s29
      %35 = dma.hbm_to_vmem [thread:$0]  %s1, 512, %s30, [#allocation6], 128, 128, 8
    $region9: #{projection_mlp_prepared.1} parent=1 // pred_fallthru
      _
    // Predicated region
    $region10: #{projection_mlp_prepared.1} parent=1 // pred_check
      _
    $region11: #{projection_mlp_prepared.1} parent=1 // pred_check_branch
      %37 = sbr.rel (0) target = $region13
    $region12: #{projection_mlp_prepared.1} parent=1 // pred_region
      _
    $region13: #{projection_mlp_prepared.1} parent=1 // pred_fallthru
      _
    // Predicated region
    $region14: #{projection_mlp_prepared.1} parent=1 // pred_check
      _
    $region15: #{projection_mlp_prepared.1} parent=1 // pred_check_branch
      %39 = sbr.rel (0) target = $region17
    $region16: #{projection_mlp_prepared.1} parent=1 // pred_region
      _
    $region17: #{projection_mlp_prepared.1} parent=1 // pred_fallthru
      _
    // Predicated region
    $region18: #{projection_mlp_prepared.1} parent=1 // pred_check
      _
    $region19: #{projection_mlp_prepared.1} parent=1 // pred_check_branch
      %41 = sbr.rel (0) target = $region21
    $region20: #{projection_mlp_prepared.1} parent=1 // pred_region
      %s43 = ssub.s32 2048, 2048
      %44 = vsyncadd [#allocation6], %s43
      %s45 = sshll.u32 [#allocation7], 4
      %s46 = int_to_ptr.vmem [resolvable:$true] %s45
      %51 = dma.hbm_to_vmem [thread:$0]  %s4, 2048, %s46, [#allocation6], 64, 64, 4
    $region21: #{projection_mlp_prepared.1} parent=1 // pred_fallthru
      _
    // Predicated region
    $region22: #{projection_mlp_prepared.1} parent=1 // pred_check
      _
    $region23: #{projection_mlp_prepared.1} parent=1 // pred_check_branch
      %53 = sbr.rel (0) target = $region25
    $region24: #{projection_mlp_prepared.1} parent=1 // pred_region
      _
    $region25: #{projection_mlp_prepared.1} parent=1 // pred_fallthru
      _
    // Predicated region
    $region26: #{projection_mlp_prepared.1} parent=1 // pred_check
      _
    $region27: #{projection_mlp_prepared.1} parent=1 // pred_check_branch
      %55 = sbr.rel (0) target = $region29
    $region28: #{projection_mlp_prepared.1} parent=1 // pred_region
      %56 = dma.done [#allocation3], 128
    $region29: #{projection_mlp_prepared.1} parent=1 // pred_fallthru
      _
    // Predicated region
    $region30: #{projection_mlp_prepared.1} parent=1 // pred_check
      _
    $region31: #{projection_mlp_prepared.1} parent=1 // pred_check_branch
      %58 = sbr.rel (0) target = $region33
    $region32: #{projection_mlp_prepared.1} parent=1 // pred_region
      %59 = dma.done [#allocation6], 512
    $region33: #{projection_mlp_prepared.1} parent=1 // pred_fallthru
      _
    // Predicated region
    $region34: #{projection_mlp_prepared.1} parent=1 // pred_check
      _
    $region35: #{projection_mlp_prepared.1} parent=1 // pred_check_branch
      %61 = sbr.rel (0) target = $region37
    $region36: #{projection_mlp_prepared.1} parent=1 // pred_region
      %62 = dma.done [#allocation6], 2048
    $region37: #{projection_mlp_prepared.1} parent=1 // pred_fallthru
      _
    %v64 = vld [vmem:[#allocation2] sm:$0xff]
    %v65 = vpack.c.bf16 %v64, %v64
    %v66 = vld [vmem:[#allocation5] sm:$0xff]
    %v67 = vld [vmem:[#allocation5 + $0x8] sm:$0xff]
    %v68 = vld [vmem:[#allocation5 + $0x10] sm:$0xff]
    %v69 = vld [vmem:[#allocation5 + $0x18] sm:$0xff]
    %v74 = vunpack.c.l.b16 %v66
    %v75 = vunpack.c.h.b16 %v66
    %v76 = vunpack.c.l.b16 %v67
    %v77 = vunpack.c.h.b16 %v67
    %v78 = vunpack.c.l.b16 %v68
    %v79 = vunpack.c.h.b16 %v68
    %v80 = vunpack.c.l.b16 %v69
    %v81 = vunpack.c.h.b16 %v69
    %v82 = vpack.c.b16 %v76, %v74
    %v83 = vpack.c.b16 %v77, %v75
    %v84 = vpack.c.b16 %v80, %v78
    %v85 = vpack.c.b16 %v81, %v79
    %vm90 = vcmask 261120
    %v92 = vsel %vm90, %v65, 0
    %94 = vmatprep.subr.bf16.mxu0 %v83
    %95 = vmatpush1.bf16.msra.mxu0 %v82
    %96 = vmatprep.subr.bf16.mxu0 %v85
    %97 = vmatpush1.bf16.msra.mxu0 %v84
    %98 = vmatprep.subr.bf16.mxu0 0
    %99 = vmatpush1.bf16.msra.mxu0 0
    %100 = vmatprep.subr.bf16.mxu0 0
    %101 = vmatpush1.bf16.msra.mxu0 0
    %102 = vmatprep.subr.bf16.mxu0 0
    %103 = vmatpush1.bf16.msra.mxu0 0
    %104 = vmatprep.subr.bf16.mxu0 0
    %105 = vmatpush1.bf16.msra.mxu0 0
    %106 = vmatprep.subr.bf16.mxu0 0
    %107 = vmatpush1.bf16.msra.mxu0 0
    %108 = vmatprep.subr.bf16.mxu0 0
    %109 = vmatpush1.bf16.msra.mxu0 0
    %110 = vmatprep.subr.bf16.mxu0 0
    %111 = vmatpush1.bf16.msra.mxu0 0
    %112 = vmatprep.subr.bf16.mxu0 0
    %113 = vmatpush1.bf16.msra.mxu0 0
    %114 = vmatprep.subr.bf16.mxu0 0
    %115 = vmatpush1.bf16.msra.mxu0 0
    %116 = vmatprep.subr.bf16.mxu0 0
    %117 = vmatpush1.bf16.msra.mxu0 0
    %118 = vmatprep.subr.bf16.mxu0 0
    %119 = vmatpush1.bf16.msra.mxu0 0
    %120 = vmatprep.subr.bf16.mxu0 0
    %121 = vmatpush1.bf16.msra.mxu0 0
    %122 = vmatprep.subr.bf16.mxu0 0
    %123 = vmatpush1.bf16.msra.mxu0 0
    %124 = vmatprep.subr.bf16.mxu0 0
    %125 = vmatpush1.bf16.msra.mxu0 0
    %126 = vmatprep.mubr.bf16.mxu0 0
    %127 = vmatmul.mubr.bf16.gmra.mrb[0].mxu0 %v92
    %v128 = vpop.f32.mrb[0].mxu0
    %v129 = vadd.f32 0.0, %v128
    %v130 = vpop.f32.mrb[0].mxu0
    %v131 = vadd.f32 0.0, %v130
    %v132 = vpop.f32.mrb[0].mxu0
    %v133 = vpop.f32.mrb[0].mxu0
    %134 = vdwg.mxu0
    %v135 = vrot.slane %v129, 4
    %v136 = vadd.f32 %v129, %v135
    %v137 = vrot.slane %v136, 2
    %v138 = vadd.f32 %v136, %v137
    %v139 = vrot.slane %v138, 1
    %v140 = vadd.f32 %v138, %v139
    %v141 = vrot.slane %v131, 4
    %v142 = vadd.f32 %v131, %v141
    %v143 = vrot.slane %v142, 2
    %v144 = vadd.f32 %v142, %v143
    %v145 = vrot.slane %v144, 1
    %v146 = vadd.f32 %v144, %v145
    %v147 = vmul.f32 %v140, 0.125
    %v148 = vmul.f32 %v146, 0.125
    %v149 = vmul.f32 %v129, %v129
    %v150 = vmul.f32 %v131, %v131
    %v151 = vrot.slane %v149, 4
    %v152 = vadd.f32 %v149, %v151
    %v153 = vrot.slane %v152, 2
    %v154 = vadd.f32 %v152, %v153
    %v155 = vrot.slane %v154, 1
    %v156 = vadd.f32 %v154, %v155
    %v157 = vrot.slane %v150, 4
    %v158 = vadd.f32 %v150, %v157
    %v159 = vrot.slane %v158, 2
    %v160 = vadd.f32 %v158, %v159
    %v161 = vrot.slane %v160, 1
    %v162 = vadd.f32 %v160, %v161
    %v163 = vmul.f32 %v156, 0.125
    %v164 = vmul.f32 %v162, 0.125
    %v165 = vmul.f32 %v147, %v147
    %v166 = vmul.f32 %v148, %v148
    %v167 = vsub.f32 %v163, %v165
    %v168 = vsub.f32 %v164, %v166
    %v169 = vmax.f32 %v167, 0.0
    %v170 = vmax.f32 %v168, 0.0
    %v171 = vld [vmem:[%s2] sm:$0x3]
    %v172 = vadd.f32 %v169, 1e-05
    %v173 = vadd.f32 %v170, 1e-05
    %v174 = vrsqrt.pop %v172
    %v175 = vrsqrt.pop %v173
    %v178 = vcombine.low %v174, %v175
    %v180 = vunpack.c.l.s4 1966171168
    %v181 = vunpack.c.0.s8 %v180
    %v182 = vlaneseq
    %v183 = vshrl.u32 %v182, 7
    %v184 = vsub.s32 %v181, %v183
    %v185 = vrot.slane %v178, %v184
    %v187 = vunpack.c.l.s4 1966171168
    %v188 = vunpack.c.0.s8 %v187
    %v189 = vlaneseq
    %v190 = vshrl.u32 %v189, 7
    %v191 = vsub.s32 %v188, %v190
    %v192 = vrot.slane %v185, %v191
    %v194 = vmul.f32 %v171, %v192
    %v195 = vld [vmem:[%s3] sm:$0x3]
    %v197 = vlaneseq
    %v198 = vshrl.u32 %v197, 7
    %v199 = vsub.s32 0, %v198
    %v200 = vrot.slane %v194, %v199
    %v201 = vlaneseq
    %v202 = vshrl.u32 %v201, 7
    %v203 = vsub.s32 1, %v202
    %v204 = vrot.slane %v194, %v203
    %v207 = vmul.f32 %v147, %v200
    %v208 = vmul.f32 %v148, %v204
    %v211 = vcombine.low %v207, %v208
    %v213 = vunpack.c.l.s4 1966171168
    %v214 = vunpack.c.0.s8 %v213
    %v215 = vlaneseq
    %v216 = vshrl.u32 %v215, 7
    %v217 = vsub.s32 %v214, %v216
    %v218 = vrot.slane %v211, %v217
    %v220 = vunpack.c.l.s4 1966171168
    %v221 = vunpack.c.0.s8 %v220
    %v222 = vlaneseq
    %v223 = vshrl.u32 %v222, 7
    %v224 = vsub.s32 %v221, %v223
    %v225 = vrot.slane %v218, %v224
    %v227 = vsub.f32 %v195, %v225
    %v228 = vmul.f32 %v129, %v200
    %v229 = vmul.f32 %v131, %v204
    %v231 = vlaneseq
    %v232 = vshrl.u32 %v231, 7
    %v233 = vsub.s32 0, %v232
    %v234 = vrot.slane %v227, %v233
    %v235 = vlaneseq
    %v236 = vshrl.u32 %v235, 7
    %v237 = vsub.s32 1, %v236
    %v238 = vrot.slane %v227, %v237
    %v241 = vadd.f32 %v228, %v234
    %v242 = vadd.f32 %v229, %v238
    %v243 = vmax.f32 %v241, 0.0
    %v244 = vmax.f32 %v242, 0.0
    %v245 = vpack.c.bf16 %v243, %v243
    %v246 = vpack.c.bf16 %v244, %v244
    %v247 = vld [vmem:[#allocation7] sm:$0xf]
    %v248 = vld [vmem:[#allocation7 + $0x4] sm:$0xf]
    %v249 = vld [vmem:[#allocation7 + $0x8] sm:$0xf]
    %v250 = vld [vmem:[#allocation7 + $0xc] sm:$0xf]
    %v251 = vld [vmem:[#allocation7 + $0x10] sm:$0xf]
    %v252 = vld [vmem:[#allocation7 + $0x14] sm:$0xf]
    %v253 = vld [vmem:[#allocation7 + $0x18] sm:$0xf]
    %v254 = vld [vmem:[#allocation7 + $0x1c] sm:$0xf]
    %v255 = vld [vmem:[#allocation7 + $0x20] sm:$0xf]
    %v256 = vld [vmem:[#allocation7 + $0x24] sm:$0xf]
    %v257 = vld [vmem:[#allocation7 + $0x28] sm:$0xf]
    %v258 = vld [vmem:[#allocation7 + $0x2c] sm:$0xf]
    %v259 = vld [vmem:[#allocation7 + $0x30] sm:$0xf]
    %v260 = vld [vmem:[#allocation7 + $0x34] sm:$0xf]
    %v261 = vld [vmem:[#allocation7 + $0x38] sm:$0xf]
    %v262 = vld [vmem:[#allocation7 + $0x3c] sm:$0xf]
    %v263 = vld [vmem:[#allocation7 + $0x40] sm:$0xf]
    %v264 = vld [vmem:[#allocation7 + $0x44] sm:$0xf]
    %v265 = vld [vmem:[#allocation7 + $0x48] sm:$0xf]
    %v266 = vld [vmem:[#allocation7 + $0x4c] sm:$0xf]
    %v267 = vld [vmem:[#allocation7 + $0x50] sm:$0xf]
    %v268 = vld [vmem:[#allocation7 + $0x54] sm:$0xf]
    %v269 = vld [vmem:[#allocation7 + $0x58] sm:$0xf]
    %v270 = vld [vmem:[#allocation7 + $0x5c] sm:$0xf]
    %v271 = vld [vmem:[#allocation7 + $0x60] sm:$0xf]
    %v272 = vld [vmem:[#allocation7 + $0x64] sm:$0xf]
    %v273 = vld [vmem:[#allocation7 + $0x68] sm:$0xf]
    %v274 = vld [vmem:[#allocation7 + $0x6c] sm:$0xf]
    %v275 = vld [vmem:[#allocation7 + $0x70] sm:$0xf]
    %v276 = vld [vmem:[#allocation7 + $0x74] sm:$0xf]
    %v277 = vld [vmem:[#allocation7 + $0x78] sm:$0xf]
    %v278 = vld [vmem:[#allocation7 + $0x7c] sm:$0xf]
    %v311 = vunpack.c.l.b16 %v247
    %v312 = vunpack.c.l.b16 %v248
    %v313 = vunpack.c.l.b16 %v249
    %v314 = vunpack.c.l.b16 %v250
    %v315 = vunpack.c.l.b16 %v251
    %v316 = vunpack.c.l.b16 %v252
    %v317 = vunpack.c.l.b16 %v253
    %v318 = vunpack.c.l.b16 %v254
    %v319 = vunpack.c.l.b16 %v255
    %v320 = vunpack.c.l.b16 %v256
    %v321 = vunpack.c.l.b16 %v257
    %v322 = vunpack.c.l.b16 %v258
    %v323 = vunpack.c.l.b16 %v259
    %v324 = vunpack.c.l.b16 %v260
    %v325 = vunpack.c.l.b16 %v261
    %v326 = vunpack.c.l.b16 %v262
    %v327 = vunpack.c.l.b16 %v263
    %v328 = vunpack.c.l.b16 %v264
    %v329 = vunpack.c.l.b16 %v265
    %v330 = vunpack.c.l.b16 %v266
    %v331 = vunpack.c.l.b16 %v267
    %v332 = vunpack.c.l.b16 %v268
    %v333 = vunpack.c.l.b16 %v269
    %v334 = vunpack.c.l.b16 %v270
    %v335 = vunpack.c.l.b16 %v271
    %v336 = vunpack.c.l.b16 %v272
    %v337 = vunpack.c.l.b16 %v273
    %v338 = vunpack.c.l.b16 %v274
    %v339 = vunpack.c.l.b16 %v275
    %v340 = vunpack.c.l.b16 %v276
    %v341 = vunpack.c.l.b16 %v277
    %v342 = vunpack.c.l.b16 %v278
    %v343 = vpack.c.b16 %v312, %v311
    %v344 = vpack.c.b16 %v314, %v313
    %v345 = vpack.c.b16 %v316, %v315
    %v346 = vpack.c.b16 %v318, %v317
    %v347 = vpack.c.b16 %v320, %v319
    %v348 = vpack.c.b16 %v322, %v321
    %v349 = vpack.c.b16 %v324, %v323
    %v350 = vpack.c.b16 %v326, %v325
    %v351 = vpack.c.b16 %v328, %v327
    %v352 = vpack.c.b16 %v330, %v329
    %v353 = vpack.c.b16 %v332, %v331
    %v354 = vpack.c.b16 %v334, %v333
    %v355 = vpack.c.b16 %v336, %v335
    %v356 = vpack.c.b16 %v338, %v337
    %v357 = vpack.c.b16 %v340, %v339
    %v358 = vpack.c.b16 %v342, %v341
    %375 = vmatprep.subr.bf16.mxu0 0
    %376 = vmatpush1.bf16.msra.mxu0 %v343
    %377 = vmatprep.subr.bf16.mxu0 0
    %378 = vmatpush1.bf16.msra.mxu0 %v344
    %379 = vmatprep.subr.bf16.mxu0 0
    %380 = vmatpush1.bf16.msra.mxu0 %v345
    %381 = vmatprep.subr.bf16.mxu0 0
    %382 = vmatpush1.bf16.msra.mxu0 %v346
    %383 = vmatprep.subr.bf16.mxu0 0
    %384 = vmatpush1.bf16.msra.mxu0 %v347
    %385 = vmatprep.subr.bf16.mxu0 0
    %386 = vmatpush1.bf16.msra.mxu0 %v348
    %387 = vmatprep.subr.bf16.mxu0 0
    %388 = vmatpush1.bf16.msra.mxu0 %v349
    %389 = vmatprep.subr.bf16.mxu0 0
    %390 = vmatpush1.bf16.msra.mxu0 %v350
    %391 = vmatprep.subr.bf16.mxu0 0
    %392 = vmatpush1.bf16.msra.mxu0 %v351
    %393 = vmatprep.subr.bf16.mxu0 0
    %394 = vmatpush1.bf16.msra.mxu0 %v352
    %395 = vmatprep.subr.bf16.mxu0 0
    %396 = vmatpush1.bf16.msra.mxu0 %v353
    %397 = vmatprep.subr.bf16.mxu0 0
    %398 = vmatpush1.bf16.msra.mxu0 %v354
    %399 = vmatprep.subr.bf16.mxu0 0
    %400 = vmatpush1.bf16.msra.mxu0 %v355
    %401 = vmatprep.subr.bf16.mxu0 0
    %402 = vmatpush1.bf16.msra.mxu0 %v356
    %403 = vmatprep.subr.bf16.mxu0 0
    %404 = vmatpush1.bf16.msra.mxu0 %v357
    %405 = vmatprep.subr.bf16.mxu0 0
    %406 = vmatpush1.bf16.msra.mxu0 %v358
    %407 = vmatprep.mubr.bf16.mxu0 %v246
    %408 = vmatmul.mubr.bf16.gmra.mrb[0].mxu0 %v245
    %v409 = vpop.f32.mrb[0].mxu0
    %v410 = vadd.f32 0.0, %v409
    %v411 = vpop.f32.mrb[0].mxu0
    %v412 = vpop.f32.mrb[0].mxu0
    %v413 = vpop.f32.mrb[0].mxu0
    %414 = vdwg.mxu0
    %p415 = scmp.eq.s32.totalorder 0, 0
    // Predicated region
    $region38: #{projection_mlp_prepared.1} parent=1 // pred_check
      %p416 = pneg %p415
    $region39: #{projection_mlp_prepared.1} parent=1 // pred_check_branch
      %418 = sbr.rel (%p416) target = $region41
    $region40: #{projection_mlp_prepared.1} parent=1 // pred_region
      %v419 = vld [vmem:[%s5] sm:$0x1]
      %v421 = vlaneseq
      %v422 = vshrl.u32 %v421, 7
      %v423 = vsub.s32 0, %v422
      %v424 = vrot.slane %v419, %v423
      %v426 = vadd.f32 %v424, %v410
      %427 = vst [vmem:[#allocation8] sm:$0xff] %v426
    $region41: #{projection_mlp_prepared.1} parent=1 // pred_fallthru
      _
    %p428 = scmp.gt.s32.totalorder 0, 0
    // Predicated region
    $region42: #{projection_mlp_prepared.1} parent=1 // pred_check
      %p429 = pneg %p428
    $region43: #{projection_mlp_prepared.1} parent=1 // pred_check_branch
      %431 = sbr.rel (%p429) target = $region45
    $region44: #{projection_mlp_prepared.1} parent=1 // pred_region
      %v432 = vld [vmem:[#allocation8] sm:$0xff]
      %v433 = vadd.f32 %v432, %v410
      %434 = vst [vmem:[#allocation8] sm:$0xff] %v433
    $region45: #{projection_mlp_prepared.1} parent=1 // pred_fallthru
      _
    // Predicated region
    $region46: #{projection_mlp_prepared.1} parent=1 // pred_check
      _
    $region47: #{projection_mlp_prepared.1} parent=1 // pred_check_branch
      %436 = sbr.rel (0) target = $region49
    $region48: #{projection_mlp_prepared.1} parent=1 // pred_region
      %s438 = ssub.s32 128, 128
      %439 = vsyncadd [#allocation4], %s438
      %s441 = sshll.u32 [#allocation8], 4
      %s442 = int_to_ptr.vmem [resolvable:$true] %s441
      %444 = dma.vmem_to_hbm [thread:$0]  %s442, 128, %s6, [#allocation4]
    $region49: #{projection_mlp_prepared.1} parent=1 // pred_fallthru
      _
    // Predicated region
    $region50: #{projection_mlp_prepared.1} parent=1 // pred_check
      _
    $region51: #{projection_mlp_prepared.1} parent=1 // pred_check_branch
      %446 = sbr.rel (0) target = $region53
    $region52: #{projection_mlp_prepared.1} parent=1 // pred_region
      %447 = dma.done [#allocation4], 128
    $region53: #{projection_mlp_prepared.1} parent=1 // pred_fallthru
      _
    %448 = vsyncpa [#allocation3], 1
    %449 = vsyncpa [#allocation6], 1
    %450 = vsyncpa [#allocation4], 1

// kernel: projection_mlp_prepared.1
$region0: #{projection_mlp_prepared.1}
  #allocation0 [shape = 'u32[]', space=smem, size = 0x4, offset = 0x4, fixed_abs, tag = 'smem constant byte address 0x4 - core index']
  #allocation1 [shape = 'u32[144,128]{1,0:T(1,128)}', space=vmem, size = 0x12000, scoped, tag = 'internal scratch']
  %s0 = inlined_call_operand.hbm [shape: f32[8,32], index: 0, kind: input, shape index: {}]
  %s1 = inlined_call_operand.hbm [shape: bf16[32,256], index: 1, kind: input, shape index: {}]
  %s2 = inlined_call_operand.vmem [shape: f32[1,256], index: 2, kind: input, shape index: {}]
  %s3 = inlined_call_operand.vmem [shape: f32[1,256], index: 3, kind: input, shape index: {}]
  %s4 = inlined_call_operand.hbm [shape: bf16[256,128], index: 4, kind: input, shape index: {}]
  %s5 = inlined_call_operand.vmem [shape: f32[1,128], index: 5, kind: input, shape index: {}]
  %s6 = inlined_call_operand.hbm [shape: f32[8,128], index: 6, kind: output, shape index: {}]
  %s7 = sld [smem:[#allocation0]]
  $region54: #{projection_mlp_prepared.1} parent=0
    _
  %s9 = ssub.s32 1, %s7
  %s10 = scalar_select 0, %s9, %s7
  $region1: #{projection_mlp_prepared.1} parent=0
    #allocation2 [shape = 'u8[4096]{0}', space=vmem, size = 0x1000, scoped, tag = 'input window, operand 0, single buffered']
    #allocation3 [shape = 's32[1]{0}', space=sflag, size = 0x4, scoped, tag = 'scoped memory for projection_mlp_prepared.1']
    #allocation4 [shape = 's32[1]{0}', space=sflag, size = 0x4, scoped, tag = 'scoped memory for projection_mlp_prepared.1']
    #allocation5 [shape = 'u8[16384]{0}', space=vmem, size = 0x4000, scoped, tag = 'input window, operand 1, single buffered']
    #allocation6 [shape = 's32[1]{0}', space=sflag, size = 0x4, scoped, tag = 'scoped memory for projection_mlp_prepared.1']
    #allocation7 [shape = 'u8[65536]{0}', space=vmem, size = 0x10000, scoped, tag = 'input window, operand 4, single buffered']
    #allocation8 [shape = 'u8[4096]{0}', space=vmem, size = 0x1000, scoped, tag = 'output window, operand 0, single buffered']
    %11 = vsyncpa [#allocation3], 0
    %12 = vsyncpa [#allocation6], 0
    %13 = vsyncpa [#allocation4], 0
    // Predicated region
    $region2: #{projection_mlp_prepared.1} parent=1 // pred_check
      _
    $region3: #{projection_mlp_prepared.1} parent=1 // pred_check_branch
      %15 = sbr.rel (0) target = $region5
    $region4: #{projection_mlp_prepared.1} parent=1 // pred_region
      %s17 = ssub.s32 128, 128
      %18 = vsyncadd [#allocation3], %s17
      %s20 = sshll.u32 [#allocation2], 4
      %s21 = int_to_ptr.vmem [resolvable:$true] %s20
      %23 = dma.hbm_to_vmem [thread:$0]  %s0, 128, %s21, [#allocation3]
    $region5: #{projection_mlp_prepared.1} parent=1 // pred_fallthru
      _
    // Predicated region
    $region6: #{projection_mlp_prepared.1} parent=1 // pred_check
      _
    $region7: #{projection_mlp_prepared.1} parent=1 // pred_check_branch
      %25 = sbr.rel (0) target = $region9
    $region8: #{projection_mlp_prepared.1} parent=1 // pred_region
      %s27 = ssub.s32 512, 512
      %28 = vsyncadd [#allocation6], %s27
      %s29 = sshll.u32 [#allocation5], 4
      %s30 = int_to_ptr.vmem [resolvable:$true] %s29
      %35 = dma.hbm_to_vmem [thread:$0]  %s1, 512, %s30, [#allocation6], 128, 128, 8
    $region9: #{projection_mlp_prepared.1} parent=1 // pred_fallthru
      _
    // Predicated region
    $region10: #{projection_mlp_prepared.1} parent=1 // pred_check
      _
    $region11: #{projection_mlp_prepared.1} parent=1 // pred_check_branch
      %37 = sbr.rel (0) target = $region13
    $region12: #{projection_mlp_prepared.1} parent=1 // pred_region
      _
    $region13: #{projection_mlp_prepared.1} parent=1 // pred_fallthru
      _
    // Predicated region
    $region14: #{projection_mlp_prepared.1} parent=1 // pred_check
      _
    $region15: #{projection_mlp_prepared.1} parent=1 // pred_check_branch
      %39 = sbr.rel (0) target = $region17
    $region16: #{projection_mlp_prepared.1} parent=1 // pred_region
      _
    $region17: #{projection_mlp_prepared.1} parent=1 // pred_fallthru
      _
    // Predicated region
    $region18: #{projection_mlp_prepared.1} parent=1 // pred_check
      _
    $region19: #{projection_mlp_prepared.1} parent=1 // pred_check_branch
      %41 = sbr.rel (0) target = $region21
    $region20: #{projection_mlp_prepared.1} parent=1 // pred_region
      %s43 = ssub.s32 2048, 2048
      %44 = vsyncadd [#allocation6], %s43
      %s45 = sshll.u32 [#allocation7], 4
      %s46 = int_to_ptr.vmem [resolvable:$true] %s45
      %51 = dma.hbm_to_vmem [thread:$0]  %s4, 2048, %s46, [#allocation6], 64, 64, 4
    $region21: #{projection_mlp_prepared.1} parent=1 // pred_fallthru
      _
    // Predicated region
    $region22: #{projection_mlp_prepared.1} parent=1 // pred_check
      _
    $region23: #{projection_mlp_prepared.1} parent=1 // pred_check_branch
      %53 = sbr.rel (0) target = $region25
    $region24: #{projection_mlp_prepared.1} parent=1 // pred_region
      _
    $region25: #{projection_mlp_prepared.1} parent=1 // pred_fallthru
      _
    // Predicated region
    $region26: #{projection_mlp_prepared.1} parent=1 // pred_check
      _
    $region27: #{projection_mlp_prepared.1} parent=1 // pred_check_branch
      %55 = sbr.rel (0) target = $region29
    $region28: #{projection_mlp_prepared.1} parent=1 // pred_region
      %56 = dma.done [#allocation3], 128
    $region29: #{projection_mlp_prepared.1} parent=1 // pred_fallthru
      _
    // Predicated region
    $region30: #{projection_mlp_prepared.1} parent=1 // pred_check
      _
    $region31: #{projection_mlp_prepared.1} parent=1 // pred_check_branch
      %58 = sbr.rel (0) target = $region33
    $region32: #{projection_mlp_prepared.1} parent=1 // pred_region
      %59 = dma.done [#allocation6], 512
    $region33: #{projection_mlp_prepared.1} parent=1 // pred_fallthru
      _
    // Predicated region
    $region34: #{projection_mlp_prepared.1} parent=1 // pred_check
      _
    $region35: #{projection_mlp_prepared.1} parent=1 // pred_check_branch
      %61 = sbr.rel (0) target = $region37
    $region36: #{projection_mlp_prepared.1} parent=1 // pred_region
      %62 = dma.done [#allocation6], 2048
    $region37: #{projection_mlp_prepared.1} parent=1 // pred_fallthru
      _
    %v64 = vld [vmem:[#allocation2] sm:$0xff]
    %v65 = vpack.c.bf16 %v64, %v64
    %v66 = vld [vmem:[#allocation5] sm:$0xff]
    %v67 = vld [vmem:[#allocation5 + $0x8] sm:$0xff]
    %v68 = vld [vmem:[#allocation5 + $0x10] sm:$0xff]
    %v69 = vld [vmem:[#allocation5 + $0x18] sm:$0xff]
    %v74 = vunpack.c.l.b16 %v66
    %v75 = vunpack.c.h.b16 %v66
    %v76 = vunpack.c.l.b16 %v67
    %v77 = vunpack.c.h.b16 %v67
    %v78 = vunpack.c.l.b16 %v68
    %v79 = vunpack.c.h.b16 %v68
    %v80 = vunpack.c.l.b16 %v69
    %v81 = vunpack.c.h.b16 %v69
    %v82 = vpack.c.b16 %v76, %v74
    %v83 = vpack.c.b16 %v77, %v75
    %v84 = vpack.c.b16 %v80, %v78
    %v85 = vpack.c.b16 %v81, %v79
    %vm90 = vcmask 261120
    %v92 = vsel %vm90, %v65, 0
    %94 = vmatprep.subr.bf16.mxu0 %v83
    %95 = vmatpush1.bf16.msra.mxu0 %v82
    %96 = vmatprep.subr.bf16.mxu0 %v85
    %97 = vmatpush1.bf16.msra.mxu0 %v84
    %98 = vmatprep.subr.bf16.mxu0 0
    %99 = vmatpush1.bf16.msra.mxu0 0
    %100 = vmatprep.subr.bf16.mxu0 0
    %101 = vmatpush1.bf16.msra.mxu0 0
    %102 = vmatprep.subr.bf16.mxu0 0
    %103 = vmatpush1.bf16.msra.mxu0 0
    %104 = vmatprep.subr.bf16.mxu0 0
    %105 = vmatpush1.bf16.msra.mxu0 0
    %106 = vmatprep.subr.bf16.mxu0 0
    %107 = vmatpush1.bf16.msra.mxu0 0
    %108 = vmatprep.subr.bf16.mxu0 0
    %109 = vmatpush1.bf16.msra.mxu0 0
    %110 = vmatprep.subr.bf16.mxu0 0
    %111 = vmatpush1.bf16.msra.mxu0 0
    %112 = vmatprep.subr.bf16.mxu0 0
    %113 = vmatpush1.bf16.msra.mxu0 0
    %114 = vmatprep.subr.bf16.mxu0 0
    %115 = vmatpush1.bf16.msra.mxu0 0
    %116 = vmatprep.subr.bf16.mxu0 0
    %117 = vmatpush1.bf16.msra.mxu0 0
    %118 = vmatprep.subr.bf16.mxu0 0
    %119 = vmatpush1.bf16.msra.mxu0 0
    %120 = vmatprep.subr.bf16.mxu0 0
    %121 = vmatpush1.bf16.msra.mxu0 0
    %122 = vmatprep.subr.bf16.mxu0 0
    %123 = vmatpush1.bf16.msra.mxu0 0
    %124 = vmatprep.subr.bf16.mxu0 0
    %125 = vmatpush1.bf16.msra.mxu0 0
    %126 = vmatprep.mubr.bf16.mxu0 0
    %127 = vmatmul.mubr.bf16.gmra.mrb[0].mxu0 %v92
    %v128 = vpop.f32.mrb[0].mxu0
    %v129 = vadd.f32 0.0, %v128
    %v130 = vpop.f32.mrb[0].mxu0
    %v131 = vadd.f32 0.0, %v130
    %v132 = vpop.f32.mrb[0].mxu0
    %v133 = vpop.f32.mrb[0].mxu0
    %134 = vdwg.mxu0
    %v135 = vrot.slane %v129, 4
    %v136 = vadd.f32 %v129, %v135
    %v137 = vrot.slane %v136, 2
    %v138 = vadd.f32 %v136, %v137
    %v139 = vrot.slane %v138, 1
    %v140 = vadd.f32 %v138, %v139
    %v141 = vrot.slane %v131, 4
    %v142 = vadd.f32 %v131, %v141
    %v143 = vrot.slane %v142, 2
    %v144 = vadd.f32 %v142, %v143
    %v145 = vrot.slane %v144, 1
    %v146 = vadd.f32 %v144, %v145
    %v147 = vmul.f32 %v140, 0.125
    %v148 = vmul.f32 %v146, 0.125
    %v149 = vmul.f32 %v129, %v129
    %v150 = vmul.f32 %v131, %v131
    %v151 = vrot.slane %v149, 4
    %v152 = vadd.f32 %v149, %v151
    %v153 = vrot.slane %v152, 2
    %v154 = vadd.f32 %v152, %v153
    %v155 = vrot.slane %v154, 1
    %v156 = vadd.f32 %v154, %v155
    %v157 = vrot.slane %v150, 4
    %v158 = vadd.f32 %v150, %v157
    %v159 = vrot.slane %v158, 2
    %v160 = vadd.f32 %v158, %v159
    %v161 = vrot.slane %v160, 1
    %v162 = vadd.f32 %v160, %v161
    %v163 = vmul.f32 %v156, 0.125
    %v164 = vmul.f32 %v162, 0.125
    %v165 = vmul.f32 %v147, %v147
    %v166 = vmul.f32 %v148, %v148
    %v167 = vsub.f32 %v163, %v165
    %v168 = vsub.f32 %v164, %v166
    %v169 = vmax.f32 %v167, 0.0
    %v170 = vmax.f32 %v168, 0.0
    %v171 = vld [vmem:[%s2] sm:$0x3]
    %v172 = vadd.f32 %v169, 1e-05
    %v173 = vadd.f32 %v170, 1e-05
    %v174 = vrsqrt.pop %v172
    %v175 = vrsqrt.pop %v173
    %v178 = vcombine.low %v174, %v175
    %v180 = vunpack.c.l.s4 1966171168
    %v181 = vunpack.c.0.s8 %v180
    %v182 = vlaneseq
    %v183 = vshrl.u32 %v182, 7
    %v184 = vsub.s32 %v181, %v183
    %v185 = vrot.slane %v178, %v184
    %v187 = vunpack.c.l.s4 1966171168
    %v188 = vunpack.c.0.s8 %v187
    %v189 = vlaneseq
    %v190 = vshrl.u32 %v189, 7
    %v191 = vsub.s32 %v188, %v190
    %v192 = vrot.slane %v185, %v191
    %v194 = vmul.f32 %v171, %v192
    %v195 = vld [vmem:[%s3] sm:$0x3]
    %v197 = vlaneseq
    %v198 = vshrl.u32 %v197, 7
    %v199 = vsub.s32 0, %v198
    %v200 = vrot.slane %v194, %v199
    %v201 = vlaneseq
    %v202 = vshrl.u32 %v201, 7
    %v203 = vsub.s32 1, %v202
    %v204 = vrot.slane %v194, %v203
    %v207 = vmul.f32 %v147, %v200
    %v208 = vmul.f32 %v148, %v204
    %v211 = vcombine.low %v207, %v208
    %v213 = vunpack.c.l.s4 1966171168
    %v214 = vunpack.c.0.s8 %v213
    %v215 = vlaneseq
    %v216 = vshrl.u32 %v215, 7
    %v217 = vsub.s32 %v214, %v216
    %v218 = vrot.slane %v211, %v217
    %v220 = vunpack.c.l.s4 1966171168
    %v221 = vunpack.c.0.s8 %v220
    %v222 = vlaneseq
    %v223 = vshrl.u32 %v222, 7
    %v224 = vsub.s32 %v221, %v223
    %v225 = vrot.slane %v218, %v224
    %v227 = vsub.f32 %v195, %v225
    %v228 = vmul.f32 %v129, %v200
    %v229 = vmul.f32 %v131, %v204
    %v231 = vlaneseq
    %v232 = vshrl.u32 %v231, 7
    %v233 = vsub.s32 0, %v232
    %v234 = vrot.slane %v227, %v233
    %v235 = vlaneseq
    %v236 = vshrl.u32 %v235, 7
    %v237 = vsub.s32 1, %v236
    %v238 = vrot.slane %v227, %v237
    %v241 = vadd.f32 %v228, %v234
    %v242 = vadd.f32 %v229, %v238
    %v243 = vmax.f32 %v241, 0.0
    %v244 = vmax.f32 %v242, 0.0
    %v245 = vpack.c.bf16 %v243, %v243
    %v246 = vpack.c.bf16 %v244, %v244
    %v247 = vld [vmem:[#allocation7] sm:$0xf]
    %v248 = vld [vmem:[#allocation7 + $0x4] sm:$0xf]
    %v249 = vld [vmem:[#allocation7 + $0x8] sm:$0xf]
    %v250 = vld [vmem:[#allocation7 + $0xc] sm:$0xf]
    %v251 = vld [vmem:[#allocation7 + $0x10] sm:$0xf]
    %v252 = vld [vmem:[#allocation7 + $0x14] sm:$0xf]
    %v253 = vld [vmem:[#allocation7 + $0x18] sm:$0xf]
    %v254 = vld [vmem:[#allocation7 + $0x1c] sm:$0xf]
    %v255 = vld [vmem:[#allocation7 + $0x20] sm:$0xf]
    %v256 = vld [vmem:[#allocation7 + $0x24] sm:$0xf]
    %v257 = vld [vmem:[#allocation7 + $0x28] sm:$0xf]
    %v258 = vld [vmem:[#allocation7 + $0x2c] sm:$0xf]
    %v259 = vld [vmem:[#allocation7 + $0x30] sm:$0xf]
    %v260 = vld [vmem:[#allocation7 + $0x34] sm:$0xf]
    %v261 = vld [vmem:[#allocation7 + $0x38] sm:$0xf]
    %v262 = vld [vmem:[#allocation7 + $0x3c] sm:$0xf]
    %v263 = vld [vmem:[#allocation7 + $0x40] sm:$0xf]
    %v264 = vld [vmem:[#allocation7 + $0x44] sm:$0xf]
    %v265 = vld [vmem:[#allocation7 + $0x48] sm:$0xf]
    %v266 = vld [vmem:[#allocation7 + $0x4c] sm:$0xf]
    %v267 = vld [vmem:[#allocation7 + $0x50] sm:$0xf]
    %v268 = vld [vmem:[#allocation7 + $0x54] sm:$0xf]
    %v269 = vld [vmem:[#allocation7 + $0x58] sm:$0xf]
    %v270 = vld [vmem:[#allocation7 + $0x5c] sm:$0xf]
    %v271 = vld [vmem:[#allocation7 + $0x60] sm:$0xf]
    %v272 = vld [vmem:[#allocation7 + $0x64] sm:$0xf]
    %v273 = vld [vmem:[#allocation7 + $0x68] sm:$0xf]
    %v274 = vld [vmem:[#allocation7 + $0x6c] sm:$0xf]
    %v275 = vld [vmem:[#allocation7 + $0x70] sm:$0xf]
    %v276 = vld [vmem:[#allocation7 + $0x74] sm:$0xf]
    %v277 = vld [vmem:[#allocation7 + $0x78] sm:$0xf]
    %v278 = vld [vmem:[#allocation7 + $0x7c] sm:$0xf]
    %v311 = vunpack.c.l.b16 %v247
    %v312 = vunpack.c.l.b16 %v248
    %v313 = vunpack.c.l.b16 %v249
    %v314 = vunpack.c.l.b16 %v250
    %v315 = vunpack.c.l.b16 %v251
    %v316 = vunpack.c.l.b16 %v252
    %v317 = vunpack.c.l.b16 %v253
    %v318 = vunpack.c.l.b16 %v254
    %v319 = vunpack.c.l.b16 %v255
    %v320 = vunpack.c.l.b16 %v256
    %v321 = vunpack.c.l.b16 %v257
    %v322 = vunpack.c.l.b16 %v258
    %v323 = vunpack.c.l.b16 %v259
    %v324 = vunpack.c.l.b16 %v260
    %v325 = vunpack.c.l.b16 %v261
    %v326 = vunpack.c.l.b16 %v262
    %v327 = vunpack.c.l.b16 %v263
    %v328 = vunpack.c.l.b16 %v264
    %v329 = vunpack.c.l.b16 %v265
    %v330 = vunpack.c.l.b16 %v266
    %v331 = vunpack.c.l.b16 %v267
    %v332 = vunpack.c.l.b16 %v268
    %v333 = vunpack.c.l.b16 %v269
    %v334 = vunpack.c.l.b16 %v270
    %v335 = vunpack.c.l.b16 %v271
    %v336 = vunpack.c.l.b16 %v272
    %v337 = vunpack.c.l.b16 %v273
    %v338 = vunpack.c.l.b16 %v274
    %v339 = vunpack.c.l.b16 %v275
    %v340 = vunpack.c.l.b16 %v276
    %v341 = vunpack.c.l.b16 %v277
    %v342 = vunpack.c.l.b16 %v278
    %v343 = vpack.c.b16 %v312, %v311
    %v344 = vpack.c.b16 %v314, %v313
    %v345 = vpack.c.b16 %v316, %v315
    %v346 = vpack.c.b16 %v318, %v317
    %v347 = vpack.c.b16 %v320, %v319
    %v348 = vpack.c.b16 %v322, %v321
    %v349 = vpack.c.b16 %v324, %v323
    %v350 = vpack.c.b16 %v326, %v325
    %v351 = vpack.c.b16 %v328, %v327
    %v352 = vpack.c.b16 %v330, %v329
    %v353 = vpack.c.b16 %v332, %v331
    %v354 = vpack.c.b16 %v334, %v333
    %v355 = vpack.c.b16 %v336, %v335
    %v356 = vpack.c.b16 %v338, %v337
    %v357 = vpack.c.b16 %v340, %v339
    %v358 = vpack.c.b16 %v342, %v341
    %375 = vmatprep.subr.bf16.mxu0 0
    %376 = vmatpush1.bf16.msra.mxu0 %v343
    %377 = vmatprep.subr.bf16.mxu0 0
    %378 = vmatpush1.bf16.msra.mxu0 %v344
    %379 = vmatprep.subr.bf16.mxu0 0
    %380 = vmatpush1.bf16.msra.mxu0 %v345
    %381 = vmatprep.subr.bf16.mxu0 0
    %382 = vmatpush1.bf16.msra.mxu0 %v346
    %383 = vmatprep.subr.bf16.mxu0 0
    %384 = vmatpush1.bf16.msra.mxu0 %v347
    %385 = vmatprep.subr.bf16.mxu0 0
    %386 = vmatpush1.bf16.msra.mxu0 %v348
    %387 = vmatprep.subr.bf16.mxu0 0
    %388 = vmatpush1.bf16.msra.mxu0 %v349
    %389 = vmatprep.subr.bf16.mxu0 0
    %390 = vmatpush1.bf16.msra.mxu0 %v350
    %391 = vmatprep.subr.bf16.mxu0 0
    %392 = vmatpush1.bf16.msra.mxu0 %v351
    %393 = vmatprep.subr.bf16.mxu0 0
    %394 = vmatpush1.bf16.msra.mxu0 %v352
    %395 = vmatprep.subr.bf16.mxu0 0
    %396 = vmatpush1.bf16.msra.mxu0 %v353
    %397 = vmatprep.subr.bf16.mxu0 0
    %398 = vmatpush1.bf16.msra.mxu0 %v354
    %399 = vmatprep.subr.bf16.mxu0 0
    %400 = vmatpush1.bf16.msra.mxu0 %v355
    %401 = vmatprep.subr.bf16.mxu0 0
    %402 = vmatpush1.bf16.msra.mxu0 %v356
    %403 = vmatprep.subr.bf16.mxu0 0
    %404 = vmatpush1.bf16.msra.mxu0 %v357
    %405 = vmatprep.subr.bf16.mxu0 0
    %406 = vmatpush1.bf16.msra.mxu0 %v358
    %407 = vmatprep.mubr.bf16.mxu0 %v246
    %408 = vmatmul.mubr.bf16.gmra.mrb[0].mxu0 %v245
    %v409 = vpop.f32.mrb[0].mxu0
    %v410 = vadd.f32 0.0, %v409
    %v411 = vpop.f32.mrb[0].mxu0
    %v412 = vpop.f32.mrb[0].mxu0
    %v413 = vpop.f32.mrb[0].mxu0
    %414 = vdwg.mxu0
    %p415 = scmp.eq.s32.totalorder 0, 0
    // Predicated region
    $region38: #{projection_mlp_prepared.1} parent=1 // pred_check
      %p416 = pneg %p415
    $region39: #{projection_mlp_prepared.1} parent=1 // pred_check_branch
      %418 = sbr.rel (%p416) target = $region41
    $region40: #{projection_mlp_prepared.1} parent=1 // pred_region
      %v419 = vld [vmem:[%s5] sm:$0x1]
      %v421 = vlaneseq
      %v422 = vshrl.u32 %v421, 7
      %v423 = vsub.s32 0, %v422
      %v424 = vrot.slane %v419, %v423
      %v426 = vadd.f32 %v424, %v410
      %427 = vst [vmem:[#allocation8] sm:$0xff] %v426
    $region41: #{projection_mlp_prepared.1} parent=1 // pred_fallthru
      _
    %p428 = scmp.gt.s32.totalorder 0, 0
    // Predicated region
    $region42: #{projection_mlp_prepared.1} parent=1 // pred_check
      %p429 = pneg %p428
    $region43: #{projection_mlp_prepared.1} parent=1 // pred_check_branch
      %431 = sbr.rel (%p429) target = $region45
    $region44: #{projection_mlp_prepared.1} parent=1 // pred_region
      %v432 = vld [vmem:[#allocation8] sm:$0xff]
      %v433 = vadd.f32 %v432, %v410
      %434 = vst [vmem:[#allocation8] sm:$0xff] %v433
    $region45: #{projection_mlp_prepared.1} parent=1 // pred_fallthru
      _
    // Predicated region
    $region46: #{projection_mlp_prepared.1} parent=1 // pred_check
      _
    $region47: #{projection_mlp_prepared.1} parent=1 // pred_check_branch
      %436 = sbr.rel (0) target = $region49
    $region48: #{projection_mlp_prepared.1} parent=1 // pred_region
      %s438 = ssub.s32 128, 128
      %439 = vsyncadd [#allocation4], %s438
      %s441 = sshll.u32 [#allocation8], 4
      %s442 = int_to_ptr.vmem [resolvable:$true] %s441
      %444 = dma.vmem_to_hbm [thread:$0]  %s442, 128, %s6, [#allocation4]
    $region49: #{projection_mlp_prepared.1} parent=1 // pred_fallthru
      _
    // Predicated region
    $region50: #{projection_mlp_prepared.1} parent=1 // pred_check
      _
    $region51: #{projection_mlp_prepared.1} parent=1 // pred_check_branch
      %446 = sbr.rel (0) target = $region53
    $region52: #{projection_mlp_prepared.1} parent=1 // pred_region
      %447 = dma.done [#allocation4], 128
    $region53: #{projection_mlp_prepared.1} parent=1 // pred_fallthru
      _
    %448 = vsyncpa [#allocation3], 1
    %449 = vsyncpa [#allocation6], 1
    %450 = vsyncpa [#allocation4], 1

</llo_original>
